<compile_context>
chip_gen: v5e
topology: v5e:2x2
jax: 0.10.0
libtpu: 0.0.40
codegen_flags: <defaults>
</compile_context>

<pallas_src>
import functools
import math

import jax
import jax.numpy as jnp
from jax import lax
from jax.experimental import pallas as pl
from jax.experimental.pallas import tpu as pltpu

_E = math.e


def _simclr2_kernel(out1_ref, out2_ref, loss_ref, neg1_acc, loss_sc,
                    *, block_k, temperature, eps):
    k = pl.program_id(0)
    nk = pl.num_programs(0)

    b = out1_ref.shape[0]
    inv_t = jnp.float32(1.0 / temperature)
    e_const = jnp.float32(_E)
    f_eps = jnp.float32(eps)

    @pl.when(k == 0)
    def _init():
        neg1_acc[...] = jnp.zeros_like(neg1_acc)
        # log(pos) = <out_1, out_2> / T ; identical for both halves, hence x2.
        q1 = out1_ref[...].astype(jnp.float32)
        q2 = out2_ref[...].astype(jnp.float32)
        loss_sc[0] = jnp.float32(-2.0) * inv_t * jnp.sum(q1 * q2)

    # Queries: full arrays, kept in native dtype (full-rate MXU for bf16 inputs).
    o1 = out1_ref[...]
    o2 = out2_ref[...]

    # Key block for this grid step (sliced from the resident arrays — no extra DMA).
    start = pl.multiple_of(k * block_k, block_k)
    key1 = out1_ref[pl.ds(start, block_k), :]
    key2 = out2_ref[pl.ds(start, block_k), :]

    dn = (((1,), (1,)), ((), ()))  # contract on the feature dim -> no transposes
    s11 = jnp.exp(lax.dot_general(o1, key1, dn,
                                  preferred_element_type=jnp.float32) * inv_t)
    s12 = jnp.exp(lax.dot_general(o1, key2, dn,
                                  preferred_element_type=jnp.float32) * inv_t)
    s22 = jnp.exp(lax.dot_general(o2, key2, dn,
                                  preferred_element_type=jnp.float32) * inv_t)

    # Top-half (o1 query) row sums: partial, accumulated across key blocks.
    neg1_acc[...] += (jnp.sum(s11, axis=-1, keepdims=True)
                      + jnp.sum(s12, axis=-1, keepdims=True))

    # Bottom-half rows owned by this key block are complete right now:
    #   neg2[j] = colsum_j(S12) + colsum_j(S22)   (S21 = S12^T, S22 symmetric)
    neg2_blk = (jnp.sum(s12, axis=0, keepdims=True)
                + jnp.sum(s22, axis=0, keepdims=True))            # [1, block_k]
    neg2_blk = jnp.maximum(neg2_blk - e_const, f_eps)
    loss_sc[0] += jnp.sum(jnp.log(neg2_blk + f_eps))

    @pl.when(k == nk - 1)
    def _finalize():
        neg1 = jnp.maximum(neg1_acc[...] - e_const, f_eps)        # [B, 1]
        total = loss_sc[0] + jnp.sum(jnp.log(neg1 + f_eps))
        loss_ref[0, 0] = total / jnp.float32(2 * b)


def _pick_block_k(b):
    for cand in (512, 256, 128):
        if b % cand == 0:
            return cand
    return b  # small / irregular batch: single key block


def simclr2_loss(out_1, out_2, temperature=1.0, eps=1e-6, block_k=None):
    """out_1, out_2: [B, D] (assumed row-normalized). Returns scalar f32 loss."""
    assert out_1.ndim == 2 and out_1.shape == out_2.shape
    b, d = out_1.shape
    if block_k is None:
        block_k = _pick_block_k(b)
    assert b % block_k == 0, (b, block_k)
    num_kb = b // block_k

    kernel = functools.partial(_simclr2_kernel, block_k=block_k,
                               temperature=temperature, eps=eps)

    cost = pl.CostEstimate(
        flops=int(2 * 3 * b * b * d + 2 * b * d),
        transcendentals=int(3 * b * b + 2 * b),
        bytes_accessed=int(2 * b * d * out_1.dtype.itemsize + 4),
    )

    out = pl.pallas_call(
        kernel,
        grid=(num_kb,),
        out_shape=jax.ShapeDtypeStruct((1, 1), jnp.float32),
        in_specs=[
            pl.BlockSpec(memory_space=pltpu.MemorySpace.VMEM),
            pl.BlockSpec(memory_space=pltpu.MemorySpace.VMEM),
        ],
        out_specs=pl.BlockSpec(memory_space=pltpu.MemorySpace.SMEM),
        scratch_shapes=[
            pltpu.VMEM((b, 1), jnp.float32),    # neg1 row-sum accumulator
            pltpu.SMEM((1,), jnp.float32),      # scalar loss accumulator
        ],
        compiler_params=pltpu.CompilerParams(
            dimension_semantics=("arbitrary",)),
        cost_estimate=cost,
    )(out_1, out_2)
    return out[0, 0]


def _reference_loss(out_1, out_2, temperature=1.0, eps=1e-6):
    """Pure-JAX reference mirroring the PyTorch forward exactly."""
    out = jnp.concatenate([out_1, out_2], axis=0)
    cov = jnp.matmul(out, out.T, precision=lax.Precision.HIGHEST)
    sim = jnp.exp(cov / temperature)
    neg = sim.sum(axis=-1)
    neg = jnp.maximum(neg - math.e, eps)
    pos = jnp.exp(jnp.sum(out_1 * out_2, axis=-1) / temperature)
    pos = jnp.concatenate([pos, pos], axis=0)
    return -jnp.mean(jnp.log(pos / (neg + eps)))


def _normalize(x):
    return x / jnp.linalg.norm(x, axis=-1, keepdims=True)


if __name__ == "__main__":
    key = jax.random.PRNGKey(0)
    k1, k2, k3, k4 = jax.random.split(key, 4)

    # Case 1: small batch, single key block (grid=(1,)).
    B, D = 8, 32
    out_1 = _normalize(jax.random.normal(k1, (B, D), dtype=jnp.float32))
    out_2 = _normalize(jax.random.normal(k2, (B, D), dtype=jnp.float32))
    loss = jax.block_until_ready(simclr2_loss(out_1, out_2))
    ref = jax.block_until_ready(_reference_loss(out_1, out_2))
    assert jnp.allclose(loss, ref, rtol=1e-5, atol=1e-5), (loss, ref)

    # Case 2: exercise the multi-step (tiled key) accumulation path.
    B2, D2 = 16, 32
    o1b = _normalize(jax.random.normal(k3, (B2, D2), dtype=jnp.float32))
    o2b = _normalize(jax.random.normal(k4, (B2, D2), dtype=jnp.float32))
    loss2 = jax.block_until_ready(simclr2_loss(o1b, o2b, block_k=8))
    ref2 = jax.block_until_ready(_reference_loss(o1b, o2b))
    assert jnp.allclose(loss2, ref2, rtol=1e-5, atol=1e-5), (loss2, ref2)

    print("KERNEL_OK")
</pallas_src>

<mosaic_0001>
module attributes {stable_mosaic.version = 11 : i64} {
  func.func @_simclr2_kernel(%arg0: i32, %arg1: memref<8x32xf32, #tpu.memory_space<vmem>>, %arg2: memref<8x32xf32, #tpu.memory_space<vmem>>, %arg3: memref<1x1xf32, #tpu.memory_space<smem>>, %arg4: memref<8x1xf32, #tpu.memory_space<vmem>>, %arg5: memref<1xf32, #tpu.memory_space<smem>>) attributes {dimension_semantics = [#tpu.dimension_semantics<arbitrary>], iteration_bounds = array<i64: 1>, scalar_prefetch = 0 : i64, scratch_operands = 2 : i64, tpu.core_type = #tpu.core_type<tc>, window_params = [{pipeline_mode = #tpu.pipeline_mode<synchronous>, transform_indices = @transform_0, window_bounds = array<i64: 8, 32>}, {pipeline_mode = #tpu.pipeline_mode<synchronous>, transform_indices = @transform_1, window_bounds = array<i64: 8, 32>}, {transform_indices = @transform_2, window_bounds = array<i64: 1, 1>}]} {
    %c0_i32 = arith.constant 0 : i32
    %0 = arith.cmpi eq, %arg0, %c0_i32 : i32
    %1 = arith.extui %0 : i1 to i32
    %cst = arith.constant 1.000000e+00 : f32
    %c0_i32_0 = arith.constant 0 : i32
    %2 = arith.cmpi ne, %1, %c0_i32_0 : i32
    scf.if %2 {
      %cst_30 = arith.constant 0.000000e+00 : f32
      %53 = vector.broadcast %cst_30 : f32 to vector<8x1xf32>
      %c0_31 = arith.constant 0 : index
      %c0_32 = arith.constant 0 : index
      %54 = vector.load %arg4[%c0_31, %c0_32] : memref<8x1xf32, #tpu.memory_space<vmem>>, vector<8x1xf32>
      tpu.vector_store %arg4[%c0_31, %c0_32], %53 {strides = array<i32>} : memref<8x1xf32, #tpu.memory_space<vmem>>, vector<8x1xf32>,
      %c0_33 = arith.constant 0 : index
      %c0_34 = arith.constant 0 : index
      %55 = vector.load %arg1[%c0_33, %c0_34] : memref<8x32xf32, #tpu.memory_space<vmem>>, vector<8x32xf32>
      %c0_35 = arith.constant 0 : index
      %c0_36 = arith.constant 0 : index
      %56 = vector.load %arg2[%c0_35, %c0_36] : memref<8x32xf32, #tpu.memory_space<vmem>>, vector<8x32xf32>
      %cst_37 = arith.constant -2.000000e+00 : f32
      %57 = arith.mulf %cst_37, %cst : f32
      %58 = arith.mulf %55, %56 : vector<8x32xf32>
      %59 = vector.shape_cast %58 : vector<8x32xf32> to vector<1x8x32xf32>
      %cst_38 = arith.constant dense<0.000000e+00> : vector<1xf32>
      %60 = vector.multi_reduction <add>, %59, %cst_38 [1, 2] : vector<1x8x32xf32> to vector<1xf32>
      %61 = vector.shape_cast %60 : vector<1xf32> to vector<1x1x1xf32>
      %62 = vector.extract %61[0, 0, 0] : f32 from vector<1x1x1xf32>
      %63 = arith.mulf %57, %62 : f32
      %c0_39 = arith.constant 0 : index
      %64 = memref.load %arg5[%c0_39] : memref<1xf32, #tpu.memory_space<smem>>
      memref.store %63, %arg5[%c0_39] : memref<1xf32, #tpu.memory_space<smem>>
    } else {
    }
    %c0 = arith.constant 0 : index
    %c0_1 = arith.constant 0 : index
    %3 = vector.load %arg1[%c0, %c0_1] : memref<8x32xf32, #tpu.memory_space<vmem>>, vector<8x32xf32>
    %c0_2 = arith.constant 0 : index
    %c0_3 = arith.constant 0 : index
    %4 = vector.load %arg2[%c0_2, %c0_3] : memref<8x32xf32, #tpu.memory_space<vmem>>, vector<8x32xf32>
    %c8_i32 = arith.constant 8 : i32
    %5 = arith.muli %arg0, %c8_i32 : i32
    %6 = tpu.assume_multiple %5, 8 : i32
    %7 = arith.index_cast %6 : i32 to index
    %c0_4 = arith.constant 0 : index
    %8 = vector.load %arg1[%7, %c0_4] : memref<8x32xf32, #tpu.memory_space<vmem>>, vector<8x32xf32>
    %9 = arith.index_cast %6 : i32 to index
    %c0_5 = arith.constant 0 : index
    %10 = vector.load %arg2[%9, %c0_5] : memref<8x32xf32, #tpu.memory_space<vmem>>, vector<8x32xf32>
    %cst_6 = arith.constant dense<0.000000e+00> : vector<8x8xf32>
    %11 = tpu.matmul %3, %8, %cst_6 {dimension_numbers = #tpu.dot_dimension_numbers<[1], [1], [0], [0], [0, 0, 1, 0], [], []>} : vector<8x32xf32>, vector<8x32xf32>, vector<8x8xf32> -> vector<8x8xf32>
    %cst_7 = arith.constant 1.000000e+00 : f32
    %12 = vector.broadcast %cst_7 : f32 to vector<8x8xf32>
    %13 = arith.mulf %11, %12 : vector<8x8xf32>
    %14 = math.exp %13 : vector<8x8xf32>
    %cst_8 = arith.constant dense<0.000000e+00> : vector<8x8xf32>
    %15 = tpu.matmul %3, %10, %cst_8 {dimension_numbers = #tpu.dot_dimension_numbers<[1], [1], [0], [0], [0, 0, 1, 0], [], []>} : vector<8x32xf32>, vector<8x32xf32>, vector<8x8xf32> -> vector<8x8xf32>
    %cst_9 = arith.constant 1.000000e+00 : f32
    %16 = vector.broadcast %cst_9 : f32 to vector<8x8xf32>
    %17 = arith.mulf %15, %16 : vector<8x8xf32>
    %18 = math.exp %17 : vector<8x8xf32>
    %cst_10 = arith.constant dense<0.000000e+00> : vector<8x8xf32>
    %19 = tpu.matmul %4, %10, %cst_10 {dimension_numbers = #tpu.dot_dimension_numbers<[1], [1], [0], [0], [0, 0, 1, 0], [], []>} : vector<8x32xf32>, vector<8x32xf32>, vector<8x8xf32> -> vector<8x8xf32>
    %cst_11 = arith.constant 1.000000e+00 : f32
    %20 = vector.broadcast %cst_11 : f32 to vector<8x8xf32>
    %21 = arith.mulf %19, %20 : vector<8x8xf32>
    %22 = math.exp %21 : vector<8x8xf32>
    %c0_12 = arith.constant 0 : index
    %c0_13 = arith.constant 0 : index
    %23 = vector.load %arg4[%c0_12, %c0_13] : memref<8x1xf32, #tpu.memory_space<vmem>>, vector<8x1xf32>
    %cst_14 = arith.constant dense<0.000000e+00> : vector<8xf32>
    %24 = vector.multi_reduction <add>, %14, %cst_14 [1] : vector<8x8xf32> to vector<8xf32>
    %25 = vector.shape_cast %24 : vector<8xf32> to vector<8x1xf32>
    %cst_15 = arith.constant dense<0.000000e+00> : vector<8xf32>
    %26 = vector.multi_reduction <add>, %18, %cst_15 [1] : vector<8x8xf32> to vector<8xf32>
    %27 = vector.shape_cast %26 : vector<8xf32> to vector<8x1xf32>
    %28 = arith.addf %25, %27 : vector<8x1xf32>
    %29 = arith.addf %23, %28 : vector<8x1xf32>
    %c0_16 = arith.constant 0 : index
    %c0_17 = arith.constant 0 : index
    %30 = vector.load %arg4[%c0_16, %c0_17] : memref<8x1xf32, #tpu.memory_space<vmem>>, vector<8x1xf32>
    tpu.vector_store %arg4[%c0_16, %c0_17], %29 {strides = array<i32>} : memref<8x1xf32, #tpu.memory_space<vmem>>, vector<8x1xf32>,
    %cst_18 = arith.constant dense<0.000000e+00> : vector<8xf32>
    %31 = vector.multi_reduction <add>, %18, %cst_18 [0] : vector<8x8xf32> to vector<8xf32>
    %32 = vector.shape_cast %31 : vector<8xf32> to vector<1x8xf32>
    %cst_19 = arith.constant dense<0.000000e+00> : vector<8xf32>
    %33 = vector.multi_reduction <add>, %22, %cst_19 [0] : vector<8x8xf32> to vector<8xf32>
    %34 = vector.shape_cast %33 : vector<8xf32> to vector<1x8xf32>
    %35 = arith.addf %32, %34 : vector<1x8xf32>
    %cst_20 = arith.constant 2.71828175 : f32
    %36 = vector.broadcast %cst_20 : f32 to vector<1x8xf32>
    %37 = arith.subf %35, %36 : vector<1x8xf32>
    %cst_21 = arith.constant 9.99999997E-7 : f32
    %38 = vector.broadcast %cst_21 : f32 to vector<1x8xf32>
    %39 = arith.maximumf %37, %38 : vector<1x8xf32>
    %c0_22 = arith.constant 0 : index
    %40 = memref.load %arg5[%c0_22] : memref<1xf32, #tpu.memory_space<smem>>
    %cst_23 = arith.constant 9.99999997E-7 : f32
    %41 = vector.broadcast %cst_23 : f32 to vector<1x8xf32>
    %42 = arith.addf %39, %41 : vector<1x8xf32>
    %43 = math.log %42 : vector<1x8xf32>
    %44 = vector.shape_cast %43 : vector<1x8xf32> to vector<1x1x8xf32>
    %cst_24 = arith.constant dense<0.000000e+00> : vector<1xf32>
    %45 = vector.multi_reduction <add>, %44, %cst_24 [1, 2] : vector<1x1x8xf32> to vector<1xf32>
    %46 = vector.shape_cast %45 : vector<1xf32> to vector<1x1x1xf32>
    %47 = vector.extract %46[0, 0, 0] : f32 from vector<1x1x1xf32>
    %48 = arith.addf %40, %47 : f32
    %c0_25 = arith.constant 0 : index
    %49 = memref.load %arg5[%c0_25] : memref<1xf32, #tpu.memory_space<smem>>
    memref.store %48, %arg5[%c0_25] : memref<1xf32, #tpu.memory_space<smem>>
    %c0_i32_26 = arith.constant 0 : i32
    %50 = arith.cmpi eq, %arg0, %c0_i32_26 : i32
    %51 = arith.extui %50 : i1 to i32
    %cst_27 = arith.constant 2.71828175 : f32
    %cst_28 = arith.constant 9.99999997E-7 : f32
    %c0_i32_29 = arith.constant 0 : i32
    %52 = arith.cmpi ne, %51, %c0_i32_29 : i32
    scf.if %52 {
      %c0_30 = arith.constant 0 : index
      %c0_31 = arith.constant 0 : index
      %53 = vector.load %arg4[%c0_30, %c0_31] : memref<8x1xf32, #tpu.memory_space<vmem>>, vector<8x1xf32>
      %54 = vector.broadcast %cst_27 : f32 to vector<8x1xf32>
      %55 = arith.subf %53, %54 : vector<8x1xf32>
      %56 = vector.broadcast %cst_28 : f32 to vector<8x1xf32>
      %57 = arith.maximumf %55, %56 : vector<8x1xf32>
      %c0_32 = arith.constant 0 : index
      %58 = memref.load %arg5[%c0_32] : memref<1xf32, #tpu.memory_space<smem>>
      %59 = vector.broadcast %cst_28 : f32 to vector<8x1xf32>
      %60 = arith.addf %57, %59 : vector<8x1xf32>
      %61 = math.log %60 : vector<8x1xf32>
      %62 = vector.shape_cast %61 : vector<8x1xf32> to vector<1x8x1xf32>
      %cst_33 = arith.constant dense<0.000000e+00> : vector<1xf32>
      %63 = vector.multi_reduction <add>, %62, %cst_33 [1, 2] : vector<1x8x1xf32> to vector<1xf32>
      %64 = vector.shape_cast %63 : vector<1xf32> to vector<1x1x1xf32>
      %65 = vector.extract %64[0, 0, 0] : f32 from vector<1x1x1xf32>
      %66 = arith.addf %58, %65 : f32
      %cst_34 = arith.constant 1.600000e+01 : f32
      %67 = arith.divf %66, %cst_34 : f32
      %c0_35 = arith.constant 0 : index
      %c0_36 = arith.constant 0 : index
      %68 = memref.load %arg3[%c0_35, %c0_36] : memref<1x1xf32, #tpu.memory_space<smem>>
      memref.store %67, %arg3[%c0_35, %c0_36] : memref<1x1xf32, #tpu.memory_space<smem>>
    } else {
    }
    return
  }
  func.func @transform_0(%arg0: i32) -> (i32, i32) {
    %c0_i32 = arith.constant 0 : i32
    %c0_i32_0 = arith.constant 0 : i32
    %c0_i32_1 = arith.constant 0 : i32
    return %c0_i32, %c0_i32_0 : i32, i32
  }
  func.func @transform_1(%arg0: i32) -> (i32, i32) {
    %c0_i32 = arith.constant 0 : i32
    %c0_i32_0 = arith.constant 0 : i32
    %c0_i32_1 = arith.constant 0 : i32
    return %c0_i32, %c0_i32_0 : i32, i32
  }
  func.func @transform_2(%arg0: i32) -> (i32, i32) {
    %c0_i32 = arith.constant 0 : i32
    %c0_i32_0 = arith.constant 0 : i32
    %c0_i32_1 = arith.constant 0 : i32
    return %c0_i32, %c0_i32_0 : i32, i32
  }
}

</mosaic_0001>

<llo_original>
// kernel: tpu_custom_call.1
$region0: #{tpu_custom_call.1}
  #allocation0 [shape = 'u32[]', space=smem, size = 0x4, offset = 0x4, fixed_abs, tag = 'smem constant byte address 0x4 - core index']
  #allocation1 [shape = 'u32[72,128]{1,0:T(1,128)}', space=vmem, size = 0x9000, scoped, tag = 'internal scratch']
  #allocation2 [shape = 'f32[8,1]{1,0:T(8,128)}', space=vmem, size = 0x1000, scoped, tag = 'scratch operand']
  #allocation3 [shape = 'f32[1]{0:T(128)}', space=smem, size = 0x200, scoped, tag = 'scratch operand']
  %s0 = inlined_call_operand.hbm [shape: f32[8,32], index: 0, kind: input, shape index: {}]
  %s1 = inlined_call_operand.hbm [shape: f32[8,32], index: 1, kind: input, shape index: {}]
  %s2 = inlined_call_operand.hbm [shape: f32[1,1], index: 2, kind: output, shape index: {}]
  %s3 = sld [smem:[#allocation0]]
  $region34: #{tpu_custom_call.1} parent=0
    _
  %s5 = ssub.s32 1, %s3
  %s6 = scalar_select 0, %s5, %s3
  $region1: #{tpu_custom_call.1} parent=0
    #allocation4 [shape = 'u8[4096]{0}', space=vmem, size = 0x1000, scoped, tag = 'input window, operand 0, single buffered']
    #allocation5 [shape = 's32[1]{0}', space=sflag, size = 0x4, scoped, tag = 'scoped memory for tpu_custom_call.1']
    #allocation6 [shape = 's32[1]{0}', space=sflag, size = 0x4, scoped, tag = 'scoped memory for tpu_custom_call.1']
    #allocation7 [shape = 'u8[4096]{0}', space=vmem, size = 0x1000, scoped, tag = 'input window, operand 1, single buffered']
    #allocation8 [shape = 's32[1]{0}', space=sflag, size = 0x4, scoped, tag = 'scoped memory for tpu_custom_call.1']
    #allocation9 [shape = 'u8[512]{0}', space=smem, size = 0x200, scoped, tag = 'output window, operand 0, single buffered']
    %7 = vsyncpa [#allocation5], 0
    %8 = vsyncpa [#allocation8], 0
    %9 = vsyncpa [#allocation6], 0
    // Predicated region
    $region2: #{tpu_custom_call.1} parent=1 // pred_check
      _
    $region3: #{tpu_custom_call.1} parent=1 // pred_check_branch
      %11 = sbr.rel (0) target = $region5
    $region4: #{tpu_custom_call.1} parent=1 // pred_region
      %13 = vsyncadd [#allocation5], 0
      %s15 = sshll.u32 %s0, 4
      %s16 = int_to_ptr.hbm [resolvable:$true] %s15
      %s17 = sshll.u32 [#allocation4], 4
      %s18 = int_to_ptr.vmem [resolvable:$true] %s17
      %20 = dma.hbm_to_vmem [thread:$0]  %s16, 128, %s18, [#allocation5]
    $region5: #{tpu_custom_call.1} parent=1 // pred_fallthru
      _
    // Predicated region
    $region6: #{tpu_custom_call.1} parent=1 // pred_check
      _
    $region7: #{tpu_custom_call.1} parent=1 // pred_check_branch
      %22 = sbr.rel (0) target = $region9
    $region8: #{tpu_custom_call.1} parent=1 // pred_region
      %24 = vsyncadd [#allocation8], 0
      %s26 = sshll.u32 %s1, 4
      %s27 = int_to_ptr.hbm [resolvable:$true] %s26
      %s28 = sshll.u32 [#allocation7], 4
      %s29 = int_to_ptr.vmem [resolvable:$true] %s28
      %31 = dma.hbm_to_vmem [thread:$0]  %s27, 128, %s29, [#allocation8]
    $region9: #{tpu_custom_call.1} parent=1 // pred_fallthru
      _
    // Predicated region
    $region10: #{tpu_custom_call.1} parent=1 // pred_check
      _
    $region11: #{tpu_custom_call.1} parent=1 // pred_check_branch
      %33 = sbr.rel (0) target = $region13
    $region12: #{tpu_custom_call.1} parent=1 // pred_region
      %35 = dma.done [#allocation5], 128
    $region13: #{tpu_custom_call.1} parent=1 // pred_fallthru
      _
    // Predicated region
    $region14: #{tpu_custom_call.1} parent=1 // pred_check
      _
    $region15: #{tpu_custom_call.1} parent=1 // pred_check_branch
      %37 = sbr.rel (0) target = $region17
    $region16: #{tpu_custom_call.1} parent=1 // pred_region
      %39 = dma.done [#allocation8], 128
    $region17: #{tpu_custom_call.1} parent=1 // pred_fallthru
      _
    %p40 = scmp.eq.s32.totalorder 0, 0
    // Predicated region
    $region18: #{tpu_custom_call.1} parent=1 // pred_check
      %p41 = pneg %p40
    $region19: #{tpu_custom_call.1} parent=1 // pred_check_branch
      %43 = sbr.rel (%p41) target = $region21
    $region20: #{tpu_custom_call.1} parent=1 // pred_region
      %vm44 = vcmask 7168
      %45 = vst.msk [vmem:[#allocation2] sm:$0xff] %vm44, 0.0
      %v46 = vld [vmem:[#allocation4] sm:$0xff]
      %v47 = vld [vmem:[#allocation7] sm:$0xff]
      %v48 = vmul.f32 %v46, %v47
      %vm49 = vcmask 261120
      %v50 = vsel %vm49, %v48, 0.0
      %51 = vadd.xlane.f32.xlu0 %v50
      %v52 = vpop.xlane.xlu0 %51
      %v53 = vrot.slane %v52, 4
      %v54 = vadd.f32 %v52, %v53
      %v55 = vrot.slane %v54, 2
      %v56 = vadd.f32 %v54, %v55
      %v57 = vrot.slane %v56, 1
      %v58 = vadd.f32 %v56, %v57
      %s59 = vtos %v58
      %s60 = smul.f32 %s59, -2.0
      %s61 = scalar_lea.smem [#allocation3], 0
      %62 = sst [smem:[%s61]] %s60
    $region21: #{tpu_custom_call.1} parent=1 // pred_fallthru
      _
    %v63 = vld [vmem:[#allocation4] sm:$0xff]
    %v64 = vld [vmem:[#allocation7] sm:$0xff]
    %s65 = smul.u32 0, 8
    %s66 = scalar_lea.vmem [#allocation4], %s65
    %v67 = vld [vmem:[%s66] sm:$0xff]
    %s68 = scalar_lea.vmem [#allocation7], %s65
    %v69 = vld [vmem:[%s68] sm:$0xff]
    %vm70 = vcmask 261120
    %v72 = vsel %vm70, %v63, 0
    %v75 = vsel %vm70, %v67, 0
    %77 = vmatpush.xpose.msra.mxu0 0.0
    %78 = vmatpush.xpose.msra.mxu0 0.0
    %79 = vmatpush.xpose.msra.mxu0 0.0
    %80 = vmatpush.xpose.msra.mxu0 0.0
    %81 = vmatpush.xpose.msra.mxu0 0.0
    %82 = vmatpush.xpose.msra.mxu0 0.0
    %83 = vmatpush.xpose.msra.mxu0 0.0
    %84 = vmatpush.xpose.msra.mxu0 0.0
    %85 = vmatpush.xpose.msra.mxu0 0.0
    %86 = vmatpush.xpose.msra.mxu0 0.0
    %87 = vmatpush.xpose.msra.mxu0 0.0
    %88 = vmatpush.xpose.msra.mxu0 0.0
    %89 = vmatpush.xpose.msra.mxu0 0.0
    %90 = vmatpush.xpose.msra.mxu0 0.0
    %91 = vmatpush.xpose.msra.mxu0 0.0
    %92 = vmatpush.xpose.msra.mxu0 %v75
    %93 = vmatmul.f32.gmra.mxu0 %v72
    %v94 = vpop.f32.mrf.mxu0
    %v95 = vadd.f32 0.0, %v94
    %96 = vdwg.mxu0
    %v97 = vmul.f32 %v95, 1.442695
    %v98 = vpow.pop %v97
    %v100 = vsel %vm70, %v69, 0
    %102 = vmatpush.xpose.msra.mxu0 0.0
    %103 = vmatpush.xpose.msra.mxu0 0.0
    %104 = vmatpush.xpose.msra.mxu0 0.0
    %105 = vmatpush.xpose.msra.mxu0 0.0
    %106 = vmatpush.xpose.msra.mxu0 0.0
    %107 = vmatpush.xpose.msra.mxu0 0.0
    %108 = vmatpush.xpose.msra.mxu0 0.0
    %109 = vmatpush.xpose.msra.mxu0 0.0
    %110 = vmatpush.xpose.msra.mxu0 0.0
    %111 = vmatpush.xpose.msra.mxu0 0.0
    %112 = vmatpush.xpose.msra.mxu0 0.0
    %113 = vmatpush.xpose.msra.mxu0 0.0
    %114 = vmatpush.xpose.msra.mxu0 0.0
    %115 = vmatpush.xpose.msra.mxu0 0.0
    %116 = vmatpush.xpose.msra.mxu0 0.0
    %117 = vmatpush.xpose.msra.mxu0 %v100
    %118 = vmatmul.f32.gmra.mxu0 %v72
    %v119 = vpop.f32.mrf.mxu0
    %v120 = vadd.f32 0.0, %v119
    %121 = vdwg.mxu0
    %v122 = vmul.f32 %v120, 1.442695
    %v123 = vpow.pop %v122
    %v125 = vsel %vm70, %v64, 0
    %127 = vmatpush.xpose.msra.mxu0 0.0
    %128 = vmatpush.xpose.msra.mxu0 0.0
    %129 = vmatpush.xpose.msra.mxu0 0.0
    %130 = vmatpush.xpose.msra.mxu0 0.0
    %131 = vmatpush.xpose.msra.mxu0 0.0
    %132 = vmatpush.xpose.msra.mxu0 0.0
    %133 = vmatpush.xpose.msra.mxu0 0.0
    %134 = vmatpush.xpose.msra.mxu0 0.0
    %135 = vmatpush.xpose.msra.mxu0 0.0
    %136 = vmatpush.xpose.msra.mxu0 0.0
    %137 = vmatpush.xpose.msra.mxu0 0.0
    %138 = vmatpush.xpose.msra.mxu0 0.0
    %139 = vmatpush.xpose.msra.mxu0 0.0
    %140 = vmatpush.xpose.msra.mxu0 0.0
    %141 = vmatpush.xpose.msra.mxu0 0.0
    %142 = vmatpush.xpose.msra.mxu0 %v100
    %143 = vmatmul.f32.gmra.mxu0 %v125
    %v144 = vpop.f32.mrf.mxu0
    %v145 = vadd.f32 0.0, %v144
    %146 = vdwg.mxu0
    %v147 = vmul.f32 %v145, 1.442695
    %v148 = vpow.pop %v147
    %v149 = vld [vmem:[#allocation2] sm:$0xff]
    %vm150 = vcmask 64512
    %v151 = vsel %vm150, %v98, 0.0
    %152 = vadd.xlane.f32.xlu0 %v151
    %v153 = vpop.xlane.xlu0 %152
    %v154 = vsel %vm150, %v123, 0.0
    %155 = vadd.xlane.f32.xlu0 %v154
    %v156 = vpop.xlane.xlu0 %155
    %v157 = vadd.f32 %v153, %v156
    %v158 = vadd.f32 %v149, %v157
    %vm159 = vcmask 7168
    %160 = vst.msk [vmem:[#allocation2] sm:$0xff] %vm159, %v158
    %v161 = vrot.slane %v154, 4
    %v162 = vadd.f32 %v154, %v161
    %v163 = vrot.slane %v162, 2
    %v164 = vadd.f32 %v162, %v163
    %v165 = vrot.slane %v164, 1
    %v166 = vadd.f32 %v164, %v165
    %v167 = vsel %vm150, %v148, 0.0
    %v168 = vrot.slane %v167, 4
    %v169 = vadd.f32 %v167, %v168
    %v170 = vrot.slane %v169, 2
    %v171 = vadd.f32 %v169, %v170
    %v172 = vrot.slane %v171, 1
    %v173 = vadd.f32 %v171, %v172
    %v174 = vadd.f32 %v166, %v173
    %v175 = vsub.f32 %v174, 2.7182817
    %v176 = vmax.f32 %v175, 1e-06
    %s177 = sld [smem:[#allocation3]]
    %v178 = vadd.f32 %v176, 1e-06
    %v179 = vlog2.pop %v178
    %v180 = vmul.f32 %v179, 0.6931472
    %vm181 = vcmask 57344
    %v182 = vsel %vm181, %v180, 0.0
    %183 = vadd.xlane.f32.xlu0 %v182
    %v184 = vpop.xlane.xlu0 %183
    %v185 = vrot.slane %v184, 4
    %v186 = vadd.f32 %v184, %v185
    %v187 = vrot.slane %v186, 2
    %v188 = vadd.f32 %v186, %v187
    %v189 = vrot.slane %v188, 1
    %v190 = vadd.f32 %v188, %v189
    %s191 = vtos %v190
    %s192 = sadd.f32 %s177, %s191
    %s193 = scalar_lea.smem [#allocation3], 0
    %194 = sst [smem:[%s193]] %s192
    // Predicated region
    $region22: #{tpu_custom_call.1} parent=1 // pred_check
      %p195 = pneg %p40
    $region23: #{tpu_custom_call.1} parent=1 // pred_check_branch
      %197 = sbr.rel (%p195) target = $region25
    $region24: #{tpu_custom_call.1} parent=1 // pred_region
      %v198 = vld [vmem:[#allocation2] sm:$0xff]
      %v199 = vsub.f32 %v198, 2.7182817
      %v200 = vmax.f32 %v199, 1e-06
      %s201 = sld [smem:[#allocation3]]
      %v202 = vadd.f32 %v200, 1e-06
      %v203 = vlog2.pop %v202
      %v204 = vmul.f32 %v203, 0.6931472
      %v205 = vsel %vm159, %v204, 0.0
      %206 = vadd.xlane.f32.xlu0 %v205
      %v207 = vpop.xlane.xlu0 %206
      %v208 = vrot.slane %v207, 4
      %v209 = vadd.f32 %v207, %v208
      %v210 = vrot.slane %v209, 2
      %v211 = vadd.f32 %v209, %v210
      %v212 = vrot.slane %v211, 1
      %v213 = vadd.f32 %v211, %v212
      %s214 = vtos %v213
      %s215 = sadd.f32 %s201, %s214
      %v216 = vrcp.pop 16.0
      %v217 = vmul.f32 16.0, %v216
      %v218 = vsub.f32 1.0, %v217
      %v219 = vmul.f32 %v216, %v218
      %v220 = vadd.f32 %v216, %v219
      %vm221 = vweird.f32 %v216
      %v222 = vsel %vm221, %v216, %v220
      %s223 = vtos %v222
      %s224 = smul.f32 %s215, %s223
      %s225 = scalar_lea.smem [#allocation9], 0
      %226 = sst [smem:[%s225]] %s224
    $region25: #{tpu_custom_call.1} parent=1 // pred_fallthru
      _
    // Predicated region
    $region26: #{tpu_custom_call.1} parent=1 // pred_check
      _
    $region27: #{tpu_custom_call.1} parent=1 // pred_check_branch
      %228 = sbr.rel (0) target = $region29
    $region28: #{tpu_custom_call.1} parent=1 // pred_region
      %230 = vsyncadd [#allocation6], 0
      %s232 = sshll.u32 %s2, 4
      %s233 = int_to_ptr.hbm [resolvable:$true] %s232
      %235 = dma.smem_to_hbm [#allocation9], 16, %s233, [#allocation6]
    $region29: #{tpu_custom_call.1} parent=1 // pred_fallthru
      _
    // Predicated region
    $region30: #{tpu_custom_call.1} parent=1 // pred_check
      _
    $region31: #{tpu_custom_call.1} parent=1 // pred_check_branch
      %237 = sbr.rel (0) target = $region33
    $region32: #{tpu_custom_call.1} parent=1 // pred_region
      %239 = dma.done [#allocation6], 16
    $region33: #{tpu_custom_call.1} parent=1 // pred_fallthru
      _
    %240 = sfence
    %241 = vsyncpa [#allocation5], 1
    %242 = vsyncpa [#allocation8], 1
    %243 = vsyncpa [#allocation6], 1

</llo_original>
